<compile_context>
chip_gen: v5e
topology: v5e:2x2
jax: 0.10.0
libtpu: 0.0.40
codegen_flags: <defaults>
</compile_context>

<pallas_src>
import math

import jax
import jax.numpy as jnp
from jax import lax
from jax.experimental import pallas as pl
from jax.experimental.pallas import tpu as pltpu


ONE_HOT_MAX_VOCAB = 512        # beyond this the HBM row-gather path wins


def _round_up(x: int, m: int) -> int:
    return (x + m - 1) // m * m


def _vmem_capacity_bytes() -> int:
    """Generation-aware physical VMEM size (falls back to the v7x 64 MiB floor)."""
    try:
        return int(pltpu.get_tpu_info().vmem_capacity_bytes)
    except Exception:
        return 64 * 1024 * 1024


# ---------------------------------------------------------------------------
# Path A: small vocabulary -> one-hot matmul on the MXU, table resident in VMEM
# ---------------------------------------------------------------------------
def _embed_one_hot(ids2d, table, *, scale, tile, vmem_limit):
    n_pad, _ = ids2d.shape
    vocab_size, d_model = table.shape

    # f32 tables need HIGHEST so the *table* operand is fully split through the
    # MXU's bf16 decomposition (the one-hot side is exact 0/1 either way);
    # bf16 / other tables take the cheap single-pass DEFAULT path.
    precision = (lax.Precision.HIGHEST if table.dtype == jnp.float32
                 else lax.Precision.DEFAULT)

    def kernel(ids_ref, table_ref, out_ref):
        # ids_ref:   VMEM (tile, 1) int32
        # table_ref: VMEM (vocab_size, d_model) -- whole table, single-buffered
        # out_ref:   VMEM (tile, d_model)
        ids_tile = ids_ref[...]                                        # (T, 1)
        col = lax.broadcasted_iota(jnp.int32, (tile, vocab_size), 1)
        # Exact 0/1 one-hot (scale NOT folded in -> nothing rounded to the
        # table dtype).  NOTE: iota/compare re-runs every step; hoisting it
        # into scratch with a first-visit guard is unsafe under megacore
        # ("parallel") splitting, and it is free filler when the MXU binds.
        one_hot = jnp.where(ids_tile == col,
                            jnp.asarray(1.0, table_ref.dtype),
                            jnp.asarray(0.0, table_ref.dtype))          # (T, V)
        acc = jnp.dot(one_hot, table_ref[...],
                      preferred_element_type=jnp.float32,
                      precision=precision)                              # (T, D)
        # sqrt(d_model) applied to the f32 accumulator: one VPU pass over
        # (T, d_model), better numerics than scaling inside the one-hot.
        out_ref[...] = (acc * scale).astype(out_ref.dtype)

    return pl.pallas_call(
        kernel,
        out_shape=jax.ShapeDtypeStruct((n_pad, d_model), table.dtype),
        grid_spec=pltpu.PrefetchScalarGridSpec(
            num_scalar_prefetch=0,
            grid=(n_pad // tile,),
            in_specs=[
                # per-step tile of token ids
                pl.BlockSpec((tile, 1), lambda i: (i, 0)),
                # whole embedding table, placed in VMEM exactly once
                # (single-buffered: a grid-mapped BlockSpec with a constant
                # index_map would double-buffer a grid-invariant operand).
                pl.BlockSpec(memory_space=pltpu.MemorySpace.VMEM),
            ],
            out_specs=pl.BlockSpec((tile, d_model), lambda i: (i, 0)),
        ),
        compiler_params=pltpu.CompilerParams(
            dimension_semantics=("parallel",),     # independent output tiles
            vmem_limit_bytes=vmem_limit),
    )(ids2d, table)


# ---------------------------------------------------------------------------
# Path B: large vocabulary -> scalar-prefetched ids + per-row DMA gather (HBM)
# ---------------------------------------------------------------------------
def _embed_row_gather(ids_flat, table, *, scale, tile):
    n_pad, = ids_flat.shape
    _, d_model = table.shape

    def kernel(ids_ref, table_hbm, out_ref, row_buf, sem):
        # ids_ref:   SMEM (n_pad,) int32           (scalar prefetch)
        # table_hbm: HBM  (vocab_size, d_model)    (memory_space=pl.ANY)
        # out_ref:   VMEM (tile, d_model)
        # row_buf:   VMEM (tile, d_model) scratch
        base = pl.program_id(0) * tile

        def issue(t, carry):
            row = ids_ref[base + t]
            pltpu.make_async_copy(
                table_hbm.at[pl.ds(row, 1), :],
                row_buf.at[pl.ds(t, 1), :],
                sem,
            ).start()
            return carry

        lax.fori_loop(0, tile, issue, 0)

        def drain(t, carry):
            pltpu.make_async_copy(
                table_hbm.at[pl.ds(0, 1), :],
                row_buf.at[pl.ds(t, 1), :],
                sem,
            ).wait()
            return carry

        lax.fori_loop(0, tile, drain, 0)

        out_ref[...] = (row_buf[...].astype(jnp.float32) * scale).astype(out_ref.dtype)

    # TODO(synk): per-row DMAs are d_model*itemsize bytes each; for tiny d_model
    #             a batched/strided DMA (or path A) amortises descriptor cost better.
    return pl.pallas_call(
        kernel,
        out_shape=jax.ShapeDtypeStruct((n_pad, d_model), table.dtype),
        grid_spec=pltpu.PrefetchScalarGridSpec(
            num_scalar_prefetch=1,                              # ids -> SMEM
            grid=(n_pad // tile,),
            in_specs=[pl.BlockSpec(memory_space=pl.ANY)],       # table stays in HBM
            out_specs=pl.BlockSpec((tile, d_model), lambda i, ids: (i, 0)),
            scratch_shapes=[
                pltpu.VMEM((tile, d_model), table.dtype),
                pltpu.SemaphoreType.DMA,
            ],
        ),
        compiler_params=pltpu.CompilerParams(
            dimension_semantics=("arbitrary",)),
    )(ids_flat, table)


# ---------------------------------------------------------------------------
# Wrapper: path selection, tile sizing, VMEM budgeting
# ---------------------------------------------------------------------------
def make_embedding_fn(vocab_size: int, d_model: int, token_tile: int = 256):
    """Returns embed(ids, table) computing table[ids] * sqrt(d_model)."""
    scale = float(math.sqrt(d_model))

    def embed(ids: jax.Array, table: jax.Array) -> jax.Array:
        assert table.shape == (vocab_size, d_model)
        orig_shape = ids.shape
        n_tok = int(ids.size)
        ids_flat = ids.reshape(n_tok).astype(jnp.int32)
        itemsize = table.dtype.itemsize

        vmem_cap = _vmem_capacity_bytes()
        vmem_budget = int(0.75 * vmem_cap)          # headroom for compiler scratch

        def one_hot_vmem_est(t):
            return (vocab_size * d_model * itemsize        # table (single-buffered)
                    + 2 * t * d_model * itemsize           # output tiles (2-deep)
                    + 2 * t * 4                            # ids tiles (2-deep)
                    + t * vocab_size * (itemsize + 4)      # one-hot + int32 iota temps
                    + t * d_model * 4)                     # f32 accumulator

        # Tile sizing: multiple of 16 sublanes (valid for f32 and bf16), clamped
        # for tiny inputs, then adapted to the one-hot footprint / headroom.
        tile = min(token_tile, _round_up(n_tok, 16))
        tile = max(16, _round_up(tile, 16))

        use_one_hot = vocab_size <= ONE_HOT_MAX_VOCAB
        if use_one_hot:
            while tile > 16 and one_hot_vmem_est(tile) > vmem_budget:
                tile = max(16, _round_up(tile // 2, 16))       # keep (T,V) temps small
            while (tile < 1024 and n_tok >= 2 * tile
                   and one_hot_vmem_est(2 * tile) <= vmem_budget):
                tile *= 2                                      # amortise per-step cost
            use_one_hot = one_hot_vmem_est(tile) <= vmem_budget

        n_pad = _round_up(n_tok, tile)
        if n_pad != n_tok:
            ids_flat = jnp.pad(ids_flat, (0, n_pad - n_tok))   # padded ids -> row 0

        if use_one_hot:
            est = one_hot_vmem_est(tile)
            vmem_limit = None
            if est > 16 * 1024 * 1024:
                vmem_limit = min(int(est * 1.25), int(0.9 * vmem_cap))
            out = _embed_one_hot(ids_flat.reshape(n_pad, 1), table,
                                 scale=scale, tile=tile, vmem_limit=vmem_limit)
        else:
            out = _embed_row_gather(ids_flat, table, scale=scale, tile=tile)

        if n_pad != n_tok:
            out = out[:n_tok]
        return out.reshape(*orig_shape, d_model)

    return embed


if __name__ == "__main__":
    key = jax.random.PRNGKey(0)
    k_tab_a, k_ids_a, k_tab_b, k_ids_b = jax.random.split(key, 4)
    B, S = 2, 8

    # ---- case 1: small vocab -> one-hot MXU path ---------------------------
    vocab_a, dmodel_a = 64, 128
    table_a = jax.random.normal(k_tab_a, (vocab_a, dmodel_a), dtype=jnp.float32)
    ids_a = jax.random.randint(k_ids_a, (B, S), 0, vocab_a, dtype=jnp.int32)
    out_a = jax.block_until_ready(make_embedding_fn(vocab_a, dmodel_a)(ids_a, table_a))
    ref_a = jnp.take(table_a, ids_a, axis=0) * math.sqrt(dmodel_a)
    assert out_a.shape == (B, S, dmodel_a)
    assert jnp.allclose(out_a, ref_a, atol=1e-4, rtol=1e-4)

    # ---- case 2: larger vocab -> HBM row-gather path ------------------------
    vocab_b, dmodel_b = 2048, 256
    table_b = jax.random.normal(k_tab_b, (vocab_b, dmodel_b), dtype=jnp.float32)
    ids_b = jax.random.randint(k_ids_b, (B, S), 0, vocab_b, dtype=jnp.int32)
    out_b = jax.block_until_ready(make_embedding_fn(vocab_b, dmodel_b)(ids_b, table_b))
    ref_b = jnp.take(table_b, ids_b, axis=0) * math.sqrt(dmodel_b)
    assert out_b.shape == (B, S, dmodel_b)
    assert jnp.allclose(out_b, ref_b, atol=1e-4, rtol=1e-4)

    print("KERNEL_OK")
</pallas_src>

<mosaic_0001>
module attributes {stable_mosaic.version = 11 : i64} {
  func.func @kernel(%arg0: i32, %arg1: memref<16x1xi32, #tpu.memory_space<vmem>>, %arg2: memref<64x128xf32, #tpu.memory_space<vmem>>, %arg3: memref<16x128xf32, #tpu.memory_space<vmem>>) attributes {dimension_semantics = [#tpu.dimension_semantics<parallel>], iteration_bounds = array<i64: 1>, scalar_prefetch = 0 : i64, scratch_operands = 0 : i64, tpu.core_type = #tpu.core_type<tc>, window_params = [{transform_indices = @transform_0, window_bounds = array<i64: 16, 1>}, {pipeline_mode = #tpu.pipeline_mode<synchronous>, transform_indices = @transform_1, window_bounds = array<i64: 64, 128>}, {transform_indices = @transform_2, window_bounds = array<i64: 16, 128>}]} {
    %c0 = arith.constant 0 : index
    %c0_0 = arith.constant 0 : index
    %0 = vector.load %arg1[%c0, %c0_0] : memref<16x1xi32, #tpu.memory_space<vmem>>, vector<16x1xi32>
    %1 = tpu.iota {dimensions = array<i32: 1>} : vector<16x64xi32>
    %2 = vector.broadcast %0 : vector<16x1xi32> to vector<16x64xi32>
    %3 = arith.cmpi eq, %2, %1 : vector<16x64xi32>
    %cst = arith.constant 1.000000e+00 : f32
    %cst_1 = arith.constant 0.000000e+00 : f32
    %4 = vector.broadcast %cst : f32 to vector<16x64xf32>
    %5 = vector.broadcast %cst_1 : f32 to vector<16x64xf32>
    %6 = arith.select %3, %4, %5 : vector<16x64xi1>, vector<16x64xf32>
    %c0_2 = arith.constant 0 : index
    %c0_3 = arith.constant 0 : index
    %7 = vector.load %arg2[%c0_2, %c0_3] : memref<64x128xf32, #tpu.memory_space<vmem>>, vector<64x128xf32>
    %cst_4 = arith.constant dense<0.000000e+00> : vector<16x128xf32>
    %8 = tpu.matmul %6, %7, %cst_4 {dimension_numbers = #tpu.dot_dimension_numbers<[1], [0], [0], [1], [0, 0, 1, 1], [], []>, precision = #tpu.contract_precision<fp32>} : vector<16x64xf32>, vector<64x128xf32>, vector<16x128xf32> -> vector<16x128xf32>
    %cst_5 = arith.constant 11.3137083 : f32
    %9 = vector.broadcast %cst_5 : f32 to vector<16x128xf32>
    %10 = arith.mulf %8, %9 : vector<16x128xf32>
    %c0_6 = arith.constant 0 : index
    %c0_7 = arith.constant 0 : index
    %11 = vector.load %arg3[%c0_6, %c0_7] : memref<16x128xf32, #tpu.memory_space<vmem>>, vector<16x128xf32>
    tpu.vector_store %arg3[%c0_6, %c0_7], %10 {strides = array<i32>} : memref<16x128xf32, #tpu.memory_space<vmem>>, vector<16x128xf32>,
    return
  }
  func.func @transform_0(%arg0: i32) -> (i32, i32) {
    %c0_i32 = arith.constant 0 : i32
    %c0_i32_0 = arith.constant 0 : i32
    return %arg0, %c0_i32 : i32, i32
  }
  func.func @transform_1(%arg0: i32) -> (i32, i32) {
    %c0_i32 = arith.constant 0 : i32
    %c0_i32_0 = arith.constant 0 : i32
    %c0_i32_1 = arith.constant 0 : i32
    return %c0_i32, %c0_i32_0 : i32, i32
  }
  func.func @transform_2(%arg0: i32) -> (i32, i32) {
    %c0_i32 = arith.constant 0 : i32
    %c0_i32_0 = arith.constant 0 : i32
    return %arg0, %c0_i32 : i32, i32
  }
}

</mosaic_0001>

<llo_original>
// kernel: tpu_custom_call.1
$region0: #{tpu_custom_call.1}
  #allocation0 [shape = 'u32[]', space=smem, size = 0x4, offset = 0x4, fixed_abs, tag = 'smem constant byte address 0x4 - core index']
  #allocation1 [shape = 'u32[72,128]{1,0:T(1,128)}', space=vmem, size = 0x9000, scoped, tag = 'internal scratch']
  %s0 = inlined_call_operand.vmem [shape: s32[16,1], index: 0, kind: input, shape index: {}]
  %s1 = inlined_call_operand.hbm [shape: f32[64,128], index: 1, kind: input, shape index: {}]
  %s2 = inlined_call_operand.hbm [shape: f32[16,128], index: 2, kind: output, shape index: {}]
  %s3 = sld [smem:[#allocation0]]
  $region22: #{tpu_custom_call.1} parent=0
    _
  %s5 = ssub.s32 1, %s3
  %s6 = scalar_select 0, %s5, %s3
  $region1: #{tpu_custom_call.1} parent=0
    #allocation2 [shape = 'u8[32768]{0}', space=vmem, size = 0x8000, scoped, tag = 'input window, operand 1, single buffered']
    #allocation3 [shape = 's32[1]{0}', space=sflag, size = 0x4, scoped, tag = 'scoped memory for tpu_custom_call.1']
    #allocation4 [shape = 's32[1]{0}', space=sflag, size = 0x4, scoped, tag = 'scoped memory for tpu_custom_call.1']
    #allocation5 [shape = 'u8[8192]{0}', space=vmem, size = 0x2000, scoped, tag = 'output window, operand 0, single buffered']
    %7 = vsyncpa [#allocation3], 0
    %8 = vsyncpa [#allocation4], 0
    // Predicated region
    $region2: #{tpu_custom_call.1} parent=1 // pred_check
      _
    $region3: #{tpu_custom_call.1} parent=1 // pred_check_branch
      %10 = sbr.rel (0) target = $region5
    $region4: #{tpu_custom_call.1} parent=1 // pred_region
      _
    $region5: #{tpu_custom_call.1} parent=1 // pred_fallthru
      _
    // Predicated region
    $region6: #{tpu_custom_call.1} parent=1 // pred_check
      _
    $region7: #{tpu_custom_call.1} parent=1 // pred_check_branch
      %12 = sbr.rel (0) target = $region9
    $region8: #{tpu_custom_call.1} parent=1 // pred_region
      %14 = vsyncadd [#allocation3], 0
      %s15 = sshll.u32 %s1, 4
      %s16 = int_to_ptr.hbm [resolvable:$true] %s15
      %s17 = sshll.u32 [#allocation2], 4
      %s18 = int_to_ptr.vmem [resolvable:$true] %s17
      %23 = dma.hbm_to_vmem [thread:$0]  %s16, 1024, %s18, [#allocation3], 128, 128, 8
    $region9: #{tpu_custom_call.1} parent=1 // pred_fallthru
      _
    // Predicated region
    $region10: #{tpu_custom_call.1} parent=1 // pred_check
      _
    $region11: #{tpu_custom_call.1} parent=1 // pred_check_branch
      %25 = sbr.rel (0) target = $region13
    $region12: #{tpu_custom_call.1} parent=1 // pred_region
      %27 = dma.done [#allocation3], 1024
    $region13: #{tpu_custom_call.1} parent=1 // pred_fallthru
      _
    %v28 = vld [vmem:[%s0] sm:$0xff]
    %v29 = vld [vmem:[%s0 + $0x8] sm:$0xff]
    %v30 = vlaneseq
    %v31 = vand.u32 %v30, 127
    %32 = vset.pattern.permute.xlu0 0
    %33 = vperm.xlu0 %32, %v28
    %v34 = vpop.permute.xlu0 %33
    %35 = vset.pattern.permute.xlu0 0
    %36 = vperm.xlu0 %35, %v29
    %v37 = vpop.permute.xlu0 %36
    %vm38 = vcmp.eq.s32.totalorder %v34, %v31
    %vm39 = vcmp.eq.s32.totalorder %v37, %v31
    %v40 = vsel %vm38, 1.0, 0.0
    %v41 = vsel %vm39, 1.0, 0.0
    %v42 = vld [vmem:[#allocation2] sm:$0xff]
    %v43 = vld [vmem:[#allocation2 + $0x8] sm:$0xff]
    %v44 = vld [vmem:[#allocation2 + $0x10] sm:$0xff]
    %v45 = vld [vmem:[#allocation2 + $0x18] sm:$0xff]
    %v46 = vld [vmem:[#allocation2 + $0x20] sm:$0xff]
    %v47 = vld [vmem:[#allocation2 + $0x28] sm:$0xff]
    %v48 = vld [vmem:[#allocation2 + $0x30] sm:$0xff]
    %v49 = vld [vmem:[#allocation2 + $0x38] sm:$0xff]
    %vm50 = vcmask 523264
    %v52 = vsel %vm50, %v40, 0
    %v55 = vsel %vm50, %v41, 0
    %57 = vmatpush.msra.mxu0 0.0
    %58 = vmatpush.msra.mxu0 0.0
    %59 = vmatpush.msra.mxu0 0.0
    %60 = vmatpush.msra.mxu0 0.0
    %61 = vmatpush.msra.mxu0 0.0
    %62 = vmatpush.msra.mxu0 0.0
    %63 = vmatpush.msra.mxu0 0.0
    %64 = vmatpush.msra.mxu0 0.0
    %v65 = vand.u32 %v49, 4294901760
    %66 = vmatpush.msra.mxu0 %v65
    %v67 = vand.u32 %v48, 4294901760
    %68 = vmatpush.msra.mxu0 %v67
    %v69 = vand.u32 %v47, 4294901760
    %70 = vmatpush.msra.mxu0 %v69
    %v71 = vand.u32 %v46, 4294901760
    %72 = vmatpush.msra.mxu0 %v71
    %v73 = vand.u32 %v45, 4294901760
    %74 = vmatpush.msra.mxu0 %v73
    %v75 = vand.u32 %v44, 4294901760
    %76 = vmatpush.msra.mxu0 %v75
    %v77 = vand.u32 %v43, 4294901760
    %78 = vmatpush.msra.mxu0 %v77
    %v79 = vand.u32 %v42, 4294901760
    %80 = vmatpush.msra.mxu0 %v79
    %v81 = vand.u32 %v52, 4294901760
    %v82 = vsub.f32 %v52, %v81
    %v83 = vand.u32 %v82, 4294901760
    %v84 = vsub.f32 %v82, %v83
    %v85 = vand.u32 %v84, 4294901760
    %86 = vmatmul.f32.gmra.mxu0 %v85
    %v87 = vpop.f32.mrf.mxu0
    %v88 = vadd.f32 0.0, %v87
    %v89 = vand.u32 %v55, 4294901760
    %v90 = vsub.f32 %v55, %v89
    %v91 = vand.u32 %v90, 4294901760
    %v92 = vsub.f32 %v90, %v91
    %v93 = vand.u32 %v92, 4294901760
    %94 = vmatmul.f32.gmra.mxu0 %v93
    %v95 = vpop.f32.mrf.mxu0
    %v96 = vadd.f32 0.0, %v95
    %97 = vdwg.mxu0
    %98 = vmatpush.msra.mxu0 0.0
    %99 = vmatpush.msra.mxu0 0.0
    %100 = vmatpush.msra.mxu0 0.0
    %101 = vmatpush.msra.mxu0 0.0
    %102 = vmatpush.msra.mxu0 0.0
    %103 = vmatpush.msra.mxu0 0.0
    %104 = vmatpush.msra.mxu0 0.0
    %105 = vmatpush.msra.mxu0 0.0
    %v106 = vand.u32 %v49, 4294901760
    %v107 = vsub.f32 %v49, %v106
    %v108 = vand.u32 %v107, 4294901760
    %v109 = vsub.f32 %v107, %v108
    %v110 = vand.u32 %v109, 4294901760
    %111 = vmatpush.msra.mxu0 %v110
    %v112 = vand.u32 %v48, 4294901760
    %v113 = vsub.f32 %v48, %v112
    %v114 = vand.u32 %v113, 4294901760
    %v115 = vsub.f32 %v113, %v114
    %v116 = vand.u32 %v115, 4294901760
    %117 = vmatpush.msra.mxu0 %v116
    %v118 = vand.u32 %v47, 4294901760
    %v119 = vsub.f32 %v47, %v118
    %v120 = vand.u32 %v119, 4294901760
    %v121 = vsub.f32 %v119, %v120
    %v122 = vand.u32 %v121, 4294901760
    %123 = vmatpush.msra.mxu0 %v122
    %v124 = vand.u32 %v46, 4294901760
    %v125 = vsub.f32 %v46, %v124
    %v126 = vand.u32 %v125, 4294901760
    %v127 = vsub.f32 %v125, %v126
    %v128 = vand.u32 %v127, 4294901760
    %129 = vmatpush.msra.mxu0 %v128
    %v130 = vand.u32 %v45, 4294901760
    %v131 = vsub.f32 %v45, %v130
    %v132 = vand.u32 %v131, 4294901760
    %v133 = vsub.f32 %v131, %v132
    %v134 = vand.u32 %v133, 4294901760
    %135 = vmatpush.msra.mxu0 %v134
    %v136 = vand.u32 %v44, 4294901760
    %v137 = vsub.f32 %v44, %v136
    %v138 = vand.u32 %v137, 4294901760
    %v139 = vsub.f32 %v137, %v138
    %v140 = vand.u32 %v139, 4294901760
    %141 = vmatpush.msra.mxu0 %v140
    %v142 = vand.u32 %v43, 4294901760
    %v143 = vsub.f32 %v43, %v142
    %v144 = vand.u32 %v143, 4294901760
    %v145 = vsub.f32 %v143, %v144
    %v146 = vand.u32 %v145, 4294901760
    %147 = vmatpush.msra.mxu0 %v146
    %v148 = vand.u32 %v42, 4294901760
    %v149 = vsub.f32 %v42, %v148
    %v150 = vand.u32 %v149, 4294901760
    %v151 = vsub.f32 %v149, %v150
    %v152 = vand.u32 %v151, 4294901760
    %153 = vmatpush.msra.mxu0 %v152
    %v154 = vand.u32 %v52, 4294901760
    %155 = vmatmul.f32.gmra.mxu0 %v154
    %v156 = vpop.f32.mrf.mxu0
    %v157 = vadd.f32 %v88, %v156
    %v158 = vand.u32 %v55, 4294901760
    %159 = vmatmul.f32.gmra.mxu0 %v158
    %v160 = vpop.f32.mrf.mxu0
    %v161 = vadd.f32 %v96, %v160
    %162 = vdwg.mxu0
    %163 = vmatpush.msra.mxu0 0.0
    %164 = vmatpush.msra.mxu0 0.0
    %165 = vmatpush.msra.mxu0 0.0
    %166 = vmatpush.msra.mxu0 0.0
    %167 = vmatpush.msra.mxu0 0.0
    %168 = vmatpush.msra.mxu0 0.0
    %169 = vmatpush.msra.mxu0 0.0
    %170 = vmatpush.msra.mxu0 0.0
    %v171 = vand.u32 %v49, 4294901760
    %v172 = vsub.f32 %v49, %v171
    %173 = vmatpush.msra.mxu0 %v172
    %v174 = vand.u32 %v48, 4294901760
    %v175 = vsub.f32 %v48, %v174
    %176 = vmatpush.msra.mxu0 %v175
    %v177 = vand.u32 %v47, 4294901760
    %v178 = vsub.f32 %v47, %v177
    %179 = vmatpush.msra.mxu0 %v178
    %v180 = vand.u32 %v46, 4294901760
    %v181 = vsub.f32 %v46, %v180
    %182 = vmatpush.msra.mxu0 %v181
    %v183 = vand.u32 %v45, 4294901760
    %v184 = vsub.f32 %v45, %v183
    %185 = vmatpush.msra.mxu0 %v184
    %v186 = vand.u32 %v44, 4294901760
    %v187 = vsub.f32 %v44, %v186
    %188 = vmatpush.msra.mxu0 %v187
    %v189 = vand.u32 %v43, 4294901760
    %v190 = vsub.f32 %v43, %v189
    %191 = vmatpush.msra.mxu0 %v190
    %v192 = vand.u32 %v42, 4294901760
    %v193 = vsub.f32 %v42, %v192
    %194 = vmatpush.msra.mxu0 %v193
    %v195 = vand.u32 %v52, 4294901760
    %v196 = vsub.f32 %v52, %v195
    %197 = vmatmul.f32.gmra.mxu0 %v196
    %v198 = vpop.f32.mrf.mxu0
    %v199 = vadd.f32 %v157, %v198
    %v200 = vand.u32 %v55, 4294901760
    %v201 = vsub.f32 %v55, %v200
    %202 = vmatmul.f32.gmra.mxu0 %v201
    %v203 = vpop.f32.mrf.mxu0
    %v204 = vadd.f32 %v161, %v203
    %205 = vdwg.mxu0
    %206 = vmatpush.msra.mxu0 0.0
    %207 = vmatpush.msra.mxu0 0.0
    %208 = vmatpush.msra.mxu0 0.0
    %209 = vmatpush.msra.mxu0 0.0
    %210 = vmatpush.msra.mxu0 0.0
    %211 = vmatpush.msra.mxu0 0.0
    %212 = vmatpush.msra.mxu0 0.0
    %213 = vmatpush.msra.mxu0 0.0
    %v214 = vand.u32 %v49, 4294901760
    %215 = vmatpush.msra.mxu0 %v214
    %v216 = vand.u32 %v48, 4294901760
    %217 = vmatpush.msra.mxu0 %v216
    %v218 = vand.u32 %v47, 4294901760
    %219 = vmatpush.msra.mxu0 %v218
    %v220 = vand.u32 %v46, 4294901760
    %221 = vmatpush.msra.mxu0 %v220
    %v222 = vand.u32 %v45, 4294901760
    %223 = vmatpush.msra.mxu0 %v222
    %v224 = vand.u32 %v44, 4294901760
    %225 = vmatpush.msra.mxu0 %v224
    %v226 = vand.u32 %v43, 4294901760
    %227 = vmatpush.msra.mxu0 %v226
    %v228 = vand.u32 %v42, 4294901760
    %229 = vmatpush.msra.mxu0 %v228
    %v230 = vand.u32 %v52, 4294901760
    %v231 = vsub.f32 %v52, %v230
    %v232 = vand.u32 %v231, 4294901760
    %233 = vmatmul.f32.gmra.mxu0 %v232
    %v234 = vpop.f32.mrf.mxu0
    %v235 = vadd.f32 %v199, %v234
    %v236 = vand.u32 %v55, 4294901760
    %v237 = vsub.f32 %v55, %v236
    %v238 = vand.u32 %v237, 4294901760
    %239 = vmatmul.f32.gmra.mxu0 %v238
    %v240 = vpop.f32.mrf.mxu0
    %v241 = vadd.f32 %v204, %v240
    %242 = vdwg.mxu0
    %243 = vmatpush.msra.mxu0 0.0
    %244 = vmatpush.msra.mxu0 0.0
    %245 = vmatpush.msra.mxu0 0.0
    %246 = vmatpush.msra.mxu0 0.0
    %247 = vmatpush.msra.mxu0 0.0
    %248 = vmatpush.msra.mxu0 0.0
    %249 = vmatpush.msra.mxu0 0.0
    %250 = vmatpush.msra.mxu0 0.0
    %v251 = vand.u32 %v49, 4294901760
    %v252 = vsub.f32 %v49, %v251
    %v253 = vand.u32 %v252, 4294901760
    %254 = vmatpush.msra.mxu0 %v253
    %v255 = vand.u32 %v48, 4294901760
    %v256 = vsub.f32 %v48, %v255
    %v257 = vand.u32 %v256, 4294901760
    %258 = vmatpush.msra.mxu0 %v257
    %v259 = vand.u32 %v47, 4294901760
    %v260 = vsub.f32 %v47, %v259
    %v261 = vand.u32 %v260, 4294901760
    %262 = vmatpush.msra.mxu0 %v261
    %v263 = vand.u32 %v46, 4294901760
    %v264 = vsub.f32 %v46, %v263
    %v265 = vand.u32 %v264, 4294901760
    %266 = vmatpush.msra.mxu0 %v265
    %v267 = vand.u32 %v45, 4294901760
    %v268 = vsub.f32 %v45, %v267
    %v269 = vand.u32 %v268, 4294901760
    %270 = vmatpush.msra.mxu0 %v269
    %v271 = vand.u32 %v44, 4294901760
    %v272 = vsub.f32 %v44, %v271
    %v273 = vand.u32 %v272, 4294901760
    %274 = vmatpush.msra.mxu0 %v273
    %v275 = vand.u32 %v43, 4294901760
    %v276 = vsub.f32 %v43, %v275
    %v277 = vand.u32 %v276, 4294901760
    %278 = vmatpush.msra.mxu0 %v277
    %v279 = vand.u32 %v42, 4294901760
    %v280 = vsub.f32 %v42, %v279
    %v281 = vand.u32 %v280, 4294901760
    %282 = vmatpush.msra.mxu0 %v281
    %v283 = vand.u32 %v52, 4294901760
    %284 = vmatmul.f32.gmra.mxu0 %v283
    %v285 = vpop.f32.mrf.mxu0
    %v286 = vadd.f32 %v235, %v285
    %v287 = vand.u32 %v55, 4294901760
    %288 = vmatmul.f32.gmra.mxu0 %v287
    %v289 = vpop.f32.mrf.mxu0
    %v290 = vadd.f32 %v241, %v289
    %291 = vdwg.mxu0
    %292 = vmatpush.msra.mxu0 0.0
    %293 = vmatpush.msra.mxu0 0.0
    %294 = vmatpush.msra.mxu0 0.0
    %295 = vmatpush.msra.mxu0 0.0
    %296 = vmatpush.msra.mxu0 0.0
    %297 = vmatpush.msra.mxu0 0.0
    %298 = vmatpush.msra.mxu0 0.0
    %299 = vmatpush.msra.mxu0 0.0
    %v300 = vand.u32 %v49, 4294901760
    %301 = vmatpush.msra.mxu0 %v300
    %v302 = vand.u32 %v48, 4294901760
    %303 = vmatpush.msra.mxu0 %v302
    %v304 = vand.u32 %v47, 4294901760
    %305 = vmatpush.msra.mxu0 %v304
    %v306 = vand.u32 %v46, 4294901760
    %307 = vmatpush.msra.mxu0 %v306
    %v308 = vand.u32 %v45, 4294901760
    %309 = vmatpush.msra.mxu0 %v308
    %v310 = vand.u32 %v44, 4294901760
    %311 = vmatpush.msra.mxu0 %v310
    %v312 = vand.u32 %v43, 4294901760
    %313 = vmatpush.msra.mxu0 %v312
    %v314 = vand.u32 %v42, 4294901760
    %315 = vmatpush.msra.mxu0 %v314
    %v316 = vand.u32 %v52, 4294901760
    %317 = vmatmul.f32.gmra.mxu0 %v316
    %v318 = vpop.f32.mrf.mxu0
    %v319 = vadd.f32 %v286, %v318
    %v320 = vand.u32 %v55, 4294901760
    %321 = vmatmul.f32.gmra.mxu0 %v320
    %v322 = vpop.f32.mrf.mxu0
    %v323 = vadd.f32 %v290, %v322
    %324 = vdwg.mxu0
    %v325 = vmul.f32 %v319, 11.313708
    %v326 = vmul.f32 %v323, 11.313708
    %327 = vst [vmem:[#allocation5] sm:$0xff] %v325
    %328 = vst [vmem:[#allocation5 + $0x8] sm:$0xff] %v326
    // Predicated region
    $region14: #{tpu_custom_call.1} parent=1 // pred_check
      _
    $region15: #{tpu_custom_call.1} parent=1 // pred_check_branch
      %330 = sbr.rel (0) target = $region17
    $region16: #{tpu_custom_call.1} parent=1 // pred_region
      %332 = vsyncadd [#allocation4], 0
      %s333 = sshll.u32 [#allocation5], 4
      %s334 = int_to_ptr.vmem [resolvable:$true] %s333
      %s335 = sshll.u32 %s2, 4
      %s336 = int_to_ptr.hbm [resolvable:$true] %s335
      %341 = dma.vmem_to_hbm [thread:$0]  %s334, 256, %s336, [#allocation4], 128, 128, 8
    $region17: #{tpu_custom_call.1} parent=1 // pred_fallthru
      _
    // Predicated region
    $region18: #{tpu_custom_call.1} parent=1 // pred_check
      _
    $region19: #{tpu_custom_call.1} parent=1 // pred_check_branch
      %343 = sbr.rel (0) target = $region21
    $region20: #{tpu_custom_call.1} parent=1 // pred_region
      %345 = dma.done [#allocation4], 256
    $region21: #{tpu_custom_call.1} parent=1 // pred_fallthru
      _
    %346 = vsyncpa [#allocation3], 1
    %347 = vsyncpa [#allocation4], 1

</llo_original>
